<compile_context>
chip_gen: v7x
topology: tpu7x:2x2x1
jax: 0.10.0
libtpu: 0.0.40
codegen_flags: <defaults>
</compile_context>

<pallas_src>
import jax
import jax.numpy as jnp
from jax.experimental import pallas as pl
from jax.experimental.pallas import tpu as pltpu

KH = KW = 3  # 3x3 conv, padding=1


def conv3x3_relu_kernel(x_ref, w_ref, b_ref, o_ref):
    # x_ref: (Nb, K, H*W)   bf16 im2col patches, K = KH*KW*Cin, lane-dense (H*W)
    # w_ref: (Cout, K)      bf16 flattened OHWI weights (shared by all replicas)
    # b_ref: (Cout, 1)      f32 bias
    # o_ref: (Nb, Cout, H*W) output, lane-dense, already NCHW-flattened
    nb = x_ref.shape[0]
    w = w_ref[...]
    b = b_ref[...]

    def body(i, carry):
        # (Cout, K) @ (K, H*W) -> (Cout, H*W); f32 accumulation on the MXU.
        acc = jnp.dot(w, x_ref[i], preferred_element_type=jnp.float32)
        o_ref[i] = jnp.maximum(acc + b, 0.0).astype(o_ref.dtype)
        return carry

    jax.lax.fori_loop(0, nb, body, None, unroll=True)


def parallel_autograd_forward(x_nchw, w_oihw, b):
    """Equivalent of ParallelAutograd(Conv2d(3x3, pad=1) + ReLU).forward(x)."""
    N, Cin, H, W = x_nchw.shape
    Cout = w_oihw.shape[0]
    K = KH * KW * Cin
    HW = H * W

    # Samples per grid step (amortizes ~600-cycle per-step pipeline overhead).
    NB = N if N <= 8 else 8
    assert N % NB == 0, "toy wrapper assumes N divisible by the sample block"

    # Glue: ParallelAutograd's scatter/gather is the batch/grid axis; im2col and
    # weight flattening are one-time layout plumbing in plain JAX.
    x_nhwc = jnp.transpose(x_nchw, (0, 2, 3, 1))
    x_pad = jnp.pad(x_nhwc, ((0, 0), (1, 1), (1, 1), (0, 0)))
    taps = [x_pad[:, dh:dh + H, dw:dw + W, :]
            for dh in range(KH) for dw in range(KW)]              # each (N,H,W,Cin)
    x_cols = jnp.stack(taps, axis=1)                              # (N, 9, H, W, Cin)
    x_cols = jnp.transpose(x_cols, (0, 1, 4, 2, 3)).reshape(N, K, HW)
    x_cols = x_cols.astype(jnp.bfloat16)                          # (N, K, H*W)

    # (Cout, K) with K in (dh, dw, ci) order — matches x_cols' K ordering.
    w_flat = jnp.transpose(w_oihw, (0, 2, 3, 1)).reshape(Cout, K).astype(jnp.bfloat16)
    b_col = b.reshape(Cout, 1).astype(jnp.float32)

    out = pl.pallas_call(
        conv3x3_relu_kernel,
        out_shape=jax.ShapeDtypeStruct((N, Cout, HW), x_nchw.dtype),
        grid_spec=pltpu.PrefetchScalarGridSpec(
            num_scalar_prefetch=0,
            grid=(N // NB,),                     # one grid step per sample block
            in_specs=[
                pl.BlockSpec((NB, K, HW), lambda n: (n, 0, 0)),
                pl.BlockSpec((Cout, K), lambda n: (0, 0)),
                pl.BlockSpec((Cout, 1), lambda n: (0, 0)),
            ],
            out_specs=pl.BlockSpec((NB, Cout, HW), lambda n: (n, 0, 0)),
        ),
        compiler_params=pltpu.CompilerParams(
            dimension_semantics=("parallel",)),
    )(x_cols, w_flat, b_col)

    # (N, Cout, H*W) is already NCHW-flattened: free reshape, no transpose.
    return out.reshape(N, Cout, H, W)


if __name__ == "__main__":
    key = jax.random.PRNGKey(0)
    k1, k2, k3 = jax.random.split(key, 3)

    N, Cin, H, W, Cout = 2, 4, 16, 16, 8          # batch_size = 2 replicas
    x = jax.random.normal(k1, (N, Cin, H, W), jnp.float32)
    # Deterministic synthetic weights (replica 0's state, shared by all replicas).
    w = jax.random.normal(k2, (Cout, Cin, KH, KW), jnp.float32) * 0.1
    b = jax.random.normal(k3, (Cout,), jnp.float32) * 0.1

    out = jax.block_until_ready(parallel_autograd_forward(x, w, b))

    # Reference: XLA conv (same batched semantics as the synced replicas).
    ref = jax.lax.conv_general_dilated(
        x, w, window_strides=(1, 1), padding=((1, 1), (1, 1)),
        dimension_numbers=("NCHW", "OIHW", "NCHW"))
    ref = jnp.maximum(ref + b[None, :, None, None], 0.0)

    assert out.shape == (N, Cout, H, W)
    # Tolerance loosened because kernel operands are bf16 (f32 accumulation).
    assert jnp.allclose(out, ref, atol=2e-2, rtol=2e-2)
    print("KERNEL_OK")
</pallas_src>

<mosaic_0001>
module attributes {stable_mosaic.version = 11 : i64} {
  func.func @conv3x3_relu_kernel(%arg0: i32, %arg1: memref<2x36x256xbf16, #tpu.memory_space<vmem>>, %arg2: memref<8x36xbf16, #tpu.memory_space<vmem>>, %arg3: memref<8x1xf32, #tpu.memory_space<vmem>>, %arg4: memref<2x8x256xf32, #tpu.memory_space<vmem>>) attributes {dimension_semantics = [#tpu.dimension_semantics<parallel>], iteration_bounds = array<i64: 1>, scalar_prefetch = 0 : i64, scratch_operands = 0 : i64, tpu.core_type = #tpu.core_type<tc>, window_params = [{transform_indices = @transform_0, window_bounds = array<i64: 2, 36, 256>}, {pipeline_mode = #tpu.pipeline_mode<synchronous>, transform_indices = @transform_1, window_bounds = array<i64: 8, 36>}, {pipeline_mode = #tpu.pipeline_mode<synchronous>, transform_indices = @transform_2, window_bounds = array<i64: 8, 1>}, {transform_indices = @transform_3, window_bounds = array<i64: 2, 8, 256>}]} {
    %c0 = arith.constant 0 : index
    %c0_0 = arith.constant 0 : index
    %0 = vector.load %arg2[%c0, %c0_0] : memref<8x36xbf16, #tpu.memory_space<vmem>>, vector<8x36xbf16>
    %c0_1 = arith.constant 0 : index
    %c0_2 = arith.constant 0 : index
    %1 = vector.load %arg3[%c0_1, %c0_2] : memref<8x1xf32, #tpu.memory_space<vmem>>, vector<8x1xf32>
    %c0_i32 = arith.constant 0 : i32
    %2 = arith.index_cast %c0_i32 : i32 to index
    %c0_3 = arith.constant 0 : index
    %c0_4 = arith.constant 0 : index
    %3 = vector.load %arg1[%2, %c0_3, %c0_4] : memref<2x36x256xbf16, #tpu.memory_space<vmem>>, vector<1x36x256xbf16>
    %4 = vector.shape_cast %3 : vector<1x36x256xbf16> to vector<36x256xbf16>
    %cst = arith.constant dense<0.000000e+00> : vector<8x256xf32>
    %5 = tpu.matmul %0, %4, %cst {dimension_numbers = #tpu.dot_dimension_numbers<[1], [0], [0], [1], [0, 0, 1, 1], [], []>} : vector<8x36xbf16>, vector<36x256xbf16>, vector<8x256xf32> -> vector<8x256xf32>
    %6 = vector.broadcast %1 : vector<8x1xf32> to vector<8x256xf32>
    %7 = arith.addf %5, %6 : vector<8x256xf32>
    %cst_5 = arith.constant 0.000000e+00 : f32
    %8 = vector.broadcast %cst_5 : f32 to vector<8x256xf32>
    %9 = arith.maximumf %7, %8 : vector<8x256xf32>
    %10 = arith.index_cast %c0_i32 : i32 to index
    %c0_6 = arith.constant 0 : index
    %c0_7 = arith.constant 0 : index
    %11 = vector.load %arg4[%10, %c0_6, %c0_7] : memref<2x8x256xf32, #tpu.memory_space<vmem>>, vector<1x8x256xf32>
    %12 = vector.shape_cast %11 : vector<1x8x256xf32> to vector<8x256xf32>
    %13 = vector.shape_cast %9 : vector<8x256xf32> to vector<1x8x256xf32>
    tpu.vector_store %arg4[%10, %c0_6, %c0_7], %13 {strides = array<i32>} : memref<2x8x256xf32, #tpu.memory_space<vmem>>, vector<1x8x256xf32>,
    %c1_i32 = arith.constant 1 : i32
    %14 = arith.index_cast %c1_i32 : i32 to index
    %c0_8 = arith.constant 0 : index
    %c0_9 = arith.constant 0 : index
    %15 = vector.load %arg1[%14, %c0_8, %c0_9] : memref<2x36x256xbf16, #tpu.memory_space<vmem>>, vector<1x36x256xbf16>
    %16 = vector.shape_cast %15 : vector<1x36x256xbf16> to vector<36x256xbf16>
    %cst_10 = arith.constant dense<0.000000e+00> : vector<8x256xf32>
    %17 = tpu.matmul %0, %16, %cst_10 {dimension_numbers = #tpu.dot_dimension_numbers<[1], [0], [0], [1], [0, 0, 1, 1], [], []>} : vector<8x36xbf16>, vector<36x256xbf16>, vector<8x256xf32> -> vector<8x256xf32>
    %18 = vector.broadcast %1 : vector<8x1xf32> to vector<8x256xf32>
    %19 = arith.addf %17, %18 : vector<8x256xf32>
    %cst_11 = arith.constant 0.000000e+00 : f32
    %20 = vector.broadcast %cst_11 : f32 to vector<8x256xf32>
    %21 = arith.maximumf %19, %20 : vector<8x256xf32>
    %22 = arith.index_cast %c1_i32 : i32 to index
    %c0_12 = arith.constant 0 : index
    %c0_13 = arith.constant 0 : index
    %23 = vector.load %arg4[%22, %c0_12, %c0_13] : memref<2x8x256xf32, #tpu.memory_space<vmem>>, vector<1x8x256xf32>
    %24 = vector.shape_cast %23 : vector<1x8x256xf32> to vector<8x256xf32>
    %25 = vector.shape_cast %21 : vector<8x256xf32> to vector<1x8x256xf32>
    tpu.vector_store %arg4[%22, %c0_12, %c0_13], %25 {strides = array<i32>} : memref<2x8x256xf32, #tpu.memory_space<vmem>>, vector<1x8x256xf32>,
    %c2_i32 = arith.constant 2 : i32
    return
  }
  func.func @transform_0(%arg0: i32) -> (i32, i32, i32) {
    %c0_i32 = arith.constant 0 : i32
    %c0_i32_0 = arith.constant 0 : i32
    %c0_i32_1 = arith.constant 0 : i32
    return %arg0, %c0_i32, %c0_i32_0 : i32, i32, i32
  }
  func.func @transform_1(%arg0: i32) -> (i32, i32) {
    %c0_i32 = arith.constant 0 : i32
    %c0_i32_0 = arith.constant 0 : i32
    %c0_i32_1 = arith.constant 0 : i32
    return %c0_i32, %c0_i32_0 : i32, i32
  }
  func.func @transform_2(%arg0: i32) -> (i32, i32) {
    %c0_i32 = arith.constant 0 : i32
    %c0_i32_0 = arith.constant 0 : i32
    %c0_i32_1 = arith.constant 0 : i32
    return %c0_i32, %c0_i32_0 : i32, i32
  }
  func.func @transform_3(%arg0: i32) -> (i32, i32, i32) {
    %c0_i32 = arith.constant 0 : i32
    %c0_i32_0 = arith.constant 0 : i32
    %c0_i32_1 = arith.constant 0 : i32
    return %arg0, %c0_i32, %c0_i32_0 : i32, i32, i32
  }
}

</mosaic_0001>

<llo_original>
// kernel: tpu_custom_call.1
$region0: #{tpu_custom_call.1}
  #allocation0 [shape = 'u32[]', space=smem, size = 0x4, offset = 0x4, fixed_abs, tag = 'smem constant byte address 0x4 - core index']
  #allocation1 [shape = 'u32[144,128]{1,0:T(1,128)}', space=vmem, size = 0x12000, scoped, tag = 'internal scratch']
  %s0 = inlined_call_operand.vmem [shape: bf16[2,36,256], index: 0, kind: input, shape index: {}]
  %s1 = inlined_call_operand.vmem [shape: bf16[8,36], index: 1, kind: input, shape index: {}]
  %s2 = inlined_call_operand.vmem [shape: f32[8,1], index: 2, kind: input, shape index: {}]
  %s3 = inlined_call_operand.hbm [shape: f32[2,8,256], index: 3, kind: output, shape index: {}]
  %s4 = sld [smem:[#allocation0]]
  $region22: #{tpu_custom_call.1} parent=0
    _
  %s6 = ssub.s32 1, %s4
  %s7 = scalar_select 0, %s6, %s4
  $region1: #{tpu_custom_call.1} parent=0
    #allocation2 [shape = 'u8[16384]{0}', space=vmem, size = 0x4000, scoped, tag = 'output window, operand 0, single buffered']
    #allocation3 [shape = 's32[1]{0}', space=sflag, size = 0x4, scoped, tag = 'scoped memory for tpu_custom_call.1']
    %8 = vsyncpa [#allocation3], 0
    // Predicated region
    $region2: #{tpu_custom_call.1} parent=1 // pred_check
      _
    $region3: #{tpu_custom_call.1} parent=1 // pred_check_branch
      %10 = sbr.rel (0) target = $region5
    $region4: #{tpu_custom_call.1} parent=1 // pred_region
      _
    $region5: #{tpu_custom_call.1} parent=1 // pred_fallthru
      _
    // Predicated region
    $region6: #{tpu_custom_call.1} parent=1 // pred_check
      _
    $region7: #{tpu_custom_call.1} parent=1 // pred_check_branch
      %12 = sbr.rel (0) target = $region9
    $region8: #{tpu_custom_call.1} parent=1 // pred_region
      _
    $region9: #{tpu_custom_call.1} parent=1 // pred_fallthru
      _
    // Predicated region
    $region10: #{tpu_custom_call.1} parent=1 // pred_check
      _
    $region11: #{tpu_custom_call.1} parent=1 // pred_check_branch
      %14 = sbr.rel (0) target = $region13
    $region12: #{tpu_custom_call.1} parent=1 // pred_region
      _
    $region13: #{tpu_custom_call.1} parent=1 // pred_fallthru
      _
    %v16 = vld [vmem:[%s1] sm:$0xf]
    %v17 = vld [vmem:[%s2] sm:$0xff]
    %v18 = vld [vmem:[%s0] sm:$0xff]
    %v19 = vld [vmem:[%s0 + $0x8] sm:$0xff]
    %v20 = vld [vmem:[%s0 + $0x10] sm:$0xff]
    %v21 = vld [vmem:[%s0 + $0x18] sm:$0xff]
    %v22 = vld [vmem:[%s0 + $0x20] sm:$0x33]
    %24 = vset.pattern.permute.xlu0 0
    %25 = vperm.xlu0 %24, %v17
    %v26 = vpop.permute.xlu0 %25
    %v33 = vunpack.c.l.b16 %v18
    %v34 = vunpack.c.h.b16 %v18
    %v35 = vunpack.c.l.b16 %v19
    %v36 = vunpack.c.h.b16 %v19
    %v37 = vunpack.c.l.b16 %v20
    %v38 = vunpack.c.h.b16 %v20
    %v39 = vunpack.c.l.b16 %v21
    %v40 = vunpack.c.h.b16 %v21
    %v41 = vunpack.c.l.b16 %v22
    %v42 = vunpack.c.h.b16 %v22
    %v43 = vpack.c.b16 %v35, %v33
    %v44 = vpack.c.b16 %v36, %v34
    %v45 = vpack.c.b16 %v39, %v37
    %v46 = vpack.c.b16 %v40, %v38
    %v47 = vpack.c.b16 %v41, %v41
    %v48 = vpack.c.b16 %v42, %v42
    %vm53 = vcmask 293888
    %v55 = vsel %vm53, %v16, 0
    %vm57 = vcmask 1041408
    %v59 = vsel %vm57, %v47, 0
    %v62 = vsel %vm57, %v48, 0
    %64 = vmatprep.subr.bf16.mxu0 %v44
    %65 = vmatpush1.bf16.msra.mxu0 %v43
    %66 = vmatprep.subr.bf16.mxu0 %v46
    %67 = vmatpush1.bf16.msra.mxu0 %v45
    %68 = vmatprep.subr.bf16.mxu0 %v62
    %69 = vmatpush1.bf16.msra.mxu0 %v59
    %70 = vmatprep.subr.bf16.mxu0 0
    %71 = vmatpush1.bf16.msra.mxu0 0
    %72 = vmatprep.subr.bf16.mxu0 0
    %73 = vmatpush1.bf16.msra.mxu0 0
    %74 = vmatprep.subr.bf16.mxu0 0
    %75 = vmatpush1.bf16.msra.mxu0 0
    %76 = vmatprep.subr.bf16.mxu0 0
    %77 = vmatpush1.bf16.msra.mxu0 0
    %78 = vmatprep.subr.bf16.mxu0 0
    %79 = vmatpush1.bf16.msra.mxu0 0
    %80 = vmatprep.subr.bf16.mxu0 0
    %81 = vmatpush1.bf16.msra.mxu0 0
    %82 = vmatprep.subr.bf16.mxu0 0
    %83 = vmatpush1.bf16.msra.mxu0 0
    %84 = vmatprep.subr.bf16.mxu0 0
    %85 = vmatpush1.bf16.msra.mxu0 0
    %86 = vmatprep.subr.bf16.mxu0 0
    %87 = vmatpush1.bf16.msra.mxu0 0
    %88 = vmatprep.subr.bf16.mxu0 0
    %89 = vmatpush1.bf16.msra.mxu0 0
    %90 = vmatprep.subr.bf16.mxu0 0
    %91 = vmatpush1.bf16.msra.mxu0 0
    %92 = vmatprep.subr.bf16.mxu0 0
    %93 = vmatpush1.bf16.msra.mxu0 0
    %94 = vmatprep.subr.bf16.mxu0 0
    %95 = vmatpush1.bf16.msra.mxu0 0
    %96 = vmatprep.mubr.bf16.mxu0 0
    %97 = vmatmul.mubr.bf16.gmra.mrb[0].mxu0 %v55
    %v98 = vpop.f32.mrb[0].mxu0
    %v99 = vadd.f32 %v26, %v98
    %v100 = vpop.f32.mrb[0].mxu0
    %v101 = vadd.f32 %v26, %v100
    %v102 = vpop.f32.mrb[0].mxu0
    %v103 = vpop.f32.mrb[0].mxu0
    %104 = vdwg.mxu0
    %v105 = vmax.f32 %v99, 0.0
    %v106 = vmax.f32 %v101, 0.0
    %107 = vst [vmem:[#allocation2] sm:$0xff] %v105
    %108 = vst [vmem:[#allocation2 + $0x8] sm:$0xff] %v106
    %s109 = scalar_lea.vmem %s0, 40
    %v110 = vld [vmem:[%s109] sm:$0xff]
    %v111 = vld [vmem:[%s109 + $0x8] sm:$0xff]
    %v112 = vld [vmem:[%s109 + $0x10] sm:$0xff]
    %v113 = vld [vmem:[%s109 + $0x18] sm:$0xff]
    %v114 = vld [vmem:[%s109 + $0x20] sm:$0x33]
    %v120 = vunpack.c.l.b16 %v110
    %v121 = vunpack.c.h.b16 %v110
    %v122 = vunpack.c.l.b16 %v111
    %v123 = vunpack.c.h.b16 %v111
    %v124 = vunpack.c.l.b16 %v112
    %v125 = vunpack.c.h.b16 %v112
    %v126 = vunpack.c.l.b16 %v113
    %v127 = vunpack.c.h.b16 %v113
    %v128 = vunpack.c.l.b16 %v114
    %v129 = vunpack.c.h.b16 %v114
    %v130 = vpack.c.b16 %v122, %v120
    %v131 = vpack.c.b16 %v123, %v121
    %v132 = vpack.c.b16 %v126, %v124
    %v133 = vpack.c.b16 %v127, %v125
    %v134 = vpack.c.b16 %v128, %v128
    %v135 = vpack.c.b16 %v129, %v129
    %v141 = vsel %vm57, %v134, 0
    %v144 = vsel %vm57, %v135, 0
    %146 = vmatprep.subr.bf16.mxu0 %v131
    %147 = vmatpush1.bf16.msra.mxu0 %v130
    %148 = vmatprep.subr.bf16.mxu0 %v133
    %149 = vmatpush1.bf16.msra.mxu0 %v132
    %150 = vmatprep.subr.bf16.mxu0 %v144
    %151 = vmatpush1.bf16.msra.mxu0 %v141
    %152 = vmatprep.subr.bf16.mxu0 0
    %153 = vmatpush1.bf16.msra.mxu0 0
    %154 = vmatprep.subr.bf16.mxu0 0
    %155 = vmatpush1.bf16.msra.mxu0 0
    %156 = vmatprep.subr.bf16.mxu0 0
    %157 = vmatpush1.bf16.msra.mxu0 0
    %158 = vmatprep.subr.bf16.mxu0 0
    %159 = vmatpush1.bf16.msra.mxu0 0
    %160 = vmatprep.subr.bf16.mxu0 0
    %161 = vmatpush1.bf16.msra.mxu0 0
    %162 = vmatprep.subr.bf16.mxu0 0
    %163 = vmatpush1.bf16.msra.mxu0 0
    %164 = vmatprep.subr.bf16.mxu0 0
    %165 = vmatpush1.bf16.msra.mxu0 0
    %166 = vmatprep.subr.bf16.mxu0 0
    %167 = vmatpush1.bf16.msra.mxu0 0
    %168 = vmatprep.subr.bf16.mxu0 0
    %169 = vmatpush1.bf16.msra.mxu0 0
    %170 = vmatprep.subr.bf16.mxu0 0
    %171 = vmatpush1.bf16.msra.mxu0 0
    %172 = vmatprep.subr.bf16.mxu0 0
    %173 = vmatpush1.bf16.msra.mxu0 0
    %174 = vmatprep.subr.bf16.mxu0 0
    %175 = vmatpush1.bf16.msra.mxu0 0
    %176 = vmatprep.subr.bf16.mxu0 0
    %177 = vmatpush1.bf16.msra.mxu0 0
    %178 = vmatprep.mubr.bf16.mxu0 0
    %179 = vmatmul.mubr.bf16.gmra.mrb[0].mxu0 %v55
    %v180 = vpop.f32.mrb[0].mxu0
    %v181 = vadd.f32 %v26, %v180
    %v182 = vpop.f32.mrb[0].mxu0
    %v183 = vadd.f32 %v26, %v182
    %v184 = vpop.f32.mrb[0].mxu0
    %v185 = vpop.f32.mrb[0].mxu0
    %186 = vdwg.mxu0
    %v187 = vmax.f32 %v181, 0.0
    %v188 = vmax.f32 %v183, 0.0
    %s189 = scalar_lea.vmem [#allocation2], 16
    %190 = vst [vmem:[%s189] sm:$0xff] %v187
    %191 = vst [vmem:[%s189 + $0x8] sm:$0xff] %v188
    // Predicated region
    $region14: #{tpu_custom_call.1} parent=1 // pred_check
      _
    $region15: #{tpu_custom_call.1} parent=1 // pred_check_branch
      %193 = sbr.rel (0) target = $region17
    $region16: #{tpu_custom_call.1} parent=1 // pred_region
      %s195 = ssub.s32 512, 512
      %196 = vsyncadd [#allocation3], %s195
      %s197 = sshll.u32 [#allocation2], 4
      %s198 = int_to_ptr.vmem [resolvable:$true] %s197
      %203 = dma.vmem_to_hbm [thread:$0]  %s198, 512, %s3, [#allocation3], 256, 256, 16
    $region17: #{tpu_custom_call.1} parent=1 // pred_fallthru
      _
    // Predicated region
    $region18: #{tpu_custom_call.1} parent=1 // pred_check
      _
    $region19: #{tpu_custom_call.1} parent=1 // pred_check_branch
      %205 = sbr.rel (0) target = $region21
    $region20: #{tpu_custom_call.1} parent=1 // pred_region
      %206 = dma.done [#allocation3], 512
    $region21: #{tpu_custom_call.1} parent=1 // pred_fallthru
      _
    %207 = vsyncpa [#allocation3], 1

</llo_original>
